<compile_context>
chip_gen: v7x
topology: tpu7x:2x2x1
jax: 0.10.0
libtpu: 0.0.40
codegen_flags: <defaults>
</compile_context>

<pallas_src>
import functools

import jax
import jax.numpy as jnp
from jax.experimental import pallas as pl
from jax.experimental.pallas import tpu as pltpu

LANES = 128
MAX_BLOCK_ROWS = 1024   # (1024,128) f32 tile = 512 KiB per input
NUM_CORES = 2           # megacore split (v7x); harmless serial outer loop on 1-TC chips


def _bce_kernel(x_ref, t_ref, o_ref, acc_ref, *, n_valid, block_rows, num_blocks,
                small_acc):
    c = pl.program_id(0)            # megacore slice
    i = pl.program_id(1)            # streaming step within the slice
    steps = pl.num_programs(1)

    @pl.when(i == 0)
    def _init():
        acc_ref[...] = jnp.zeros_like(acc_ref)

    # Upcast after the tiles are already in VMEM (no HBM-side f32 copies).
    x = x_ref[...].astype(jnp.float32)
    t = t_ref[...].astype(jnp.float32)

    # Validity mask generated in-kernel from the flat element index.  This
    # covers (a) the 128-lane tail padding, (b) Pallas edge-block padding when
    # block_rows does not divide rows, and (c) dummy trailing steps whose block
    # index was clamped in the index_map (their contribution must be zero).
    # (int32 flat index: fine up to ~2^31 elements.)
    blk = c * steps + i
    row = jax.lax.broadcasted_iota(jnp.int32, (block_rows, LANES), 0)
    lane = jax.lax.broadcasted_iota(jnp.int32, (block_rows, LANES), 1)
    flat = (blk * block_rows + row) * LANES + lane
    valid = flat < n_valid

    # Sanitize padded / out-of-bounds lanes so log() stays finite there; valid
    # lanes keep the module's exact (unclamped) BCE semantics.
    xs = jnp.where(valid, x, jnp.float32(0.5))
    ts = jnp.where(valid, t, jnp.float32(0.0))
    loss = -(ts * jnp.log(xs) + (1.0 - ts) * jnp.log(1.0 - xs))
    loss = jnp.where(valid, loss, jnp.float32(0.0))

    if small_acc:
        # (block_rows,128) -> (block_rows//8, 8, 128) is tile-aligned (free
        # view); the axis-0 sum is the same count of vreg adds as a full-block
        # accumulator but keeps the scratch at one vreg-tile.
        acc_ref[...] += jnp.sum(loss.reshape(block_rows // 8, 8, LANES), axis=0)
    else:
        acc_ref[...] += loss

    # Single cross-lane reduce + lane-dense (8,128) store, once per core.
    @pl.when(i == steps - 1)
    def _finalize():
        s = jnp.sum(acc_ref[...])
        r8 = jax.lax.broadcasted_iota(jnp.int32, (1, 8, LANES), 1)
        l8 = jax.lax.broadcasted_iota(jnp.int32, (1, 8, LANES), 2)
        o_ref[...] = jnp.where((r8 == 0) & (l8 == 0), s, jnp.float32(0.0))


def my_bce_loss(inp, target, reduction="mean"):
    if reduction not in ("mean", "sum"):
        raise NotImplementedError

    # Row-major flatten: free reshape, no dtype cast, no copy.
    x = jnp.reshape(inp, (-1,))
    t = jnp.reshape(target, (-1,))
    n = x.shape[0]

    # Pad only the tail up to the 128-lane width so the 1-D -> 2-D reshape is
    # layout-free; padded lanes are masked out inside the kernel.
    rem = n % LANES
    if rem:
        pad = LANES - rem
        x = jnp.pad(x, (0, pad))
        t = jnp.pad(t, (0, pad))
    rows = x.shape[0] // LANES
    x2 = x.reshape(rows, LANES)
    t2 = t.reshape(rows, LANES)

    # Largest block that covers the data (full-dim blocks are always legal);
    # cap at MAX_BLOCK_ROWS (divisible by 8) for large inputs.
    block_rows = rows if rows <= MAX_BLOCK_ROWS else MAX_BLOCK_ROWS
    num_blocks = pl.cdiv(rows, block_rows)
    steps = pl.cdiv(num_blocks, NUM_CORES)

    # Tiny-vreg accumulator path whenever the block is (8,128)-aligned (always
    # true for large inputs and for typical image-shaped tensors).
    small_acc = (block_rows % 8 == 0)
    acc_shape = (8, LANES) if small_acc else (block_rows, LANES)

    def in_map(c, i):
        # Clamp so a (rare) dummy trailing step re-reads an in-bounds block;
        # its contribution is fully masked out in-kernel.
        return (jnp.minimum(c * steps + i, num_blocks - 1), 0)

    kernel = functools.partial(
        _bce_kernel,
        n_valid=n,
        block_rows=block_rows,
        num_blocks=num_blocks,
        small_acc=small_acc,
    )

    partials = pl.pallas_call(
        kernel,
        out_shape=jax.ShapeDtypeStruct((NUM_CORES, 8, LANES), jnp.float32),
        grid_spec=pltpu.PrefetchScalarGridSpec(
            num_scalar_prefetch=0,
            grid=(NUM_CORES, steps),
            in_specs=[
                pl.BlockSpec((block_rows, LANES), in_map),
                pl.BlockSpec((block_rows, LANES), in_map),
            ],
            out_specs=pl.BlockSpec((1, 8, LANES), lambda c, i: (c, 0, 0)),
            scratch_shapes=[pltpu.VMEM(acc_shape, jnp.float32)],
        ),
        compiler_params=pltpu.CompilerParams(
            dimension_semantics=("parallel", "arbitrary"),
        ),
    )(x2, t2)

    total = jnp.sum(partials)          # sum of the per-core partial sums
    if reduction == "mean":
        return total / jnp.float32(n)
    return total


if __name__ == "__main__":
    key = jax.random.PRNGKey(0)
    k1, k2 = jax.random.split(key)
    # predictions in (0, 1); targets in [0, 1] (saliency maps)
    x = jax.random.uniform(k1, (2, 4, 16, 16), jnp.float32, 1e-3, 1.0 - 1e-3)
    t = jax.random.uniform(k2, (2, 4, 16, 16), jnp.float32, 0.0, 1.0)

    loss = jax.block_until_ready(my_bce_loss(x, t, reduction="mean"))

    # reference check in plain JAX
    xr = x.reshape(-1)
    tr = t.reshape(-1)
    ref_elem = -(tr * jnp.log(xr) + (1.0 - tr) * jnp.log(1.0 - xr))
    ref_mean = jnp.mean(ref_elem)
    assert jnp.allclose(loss, ref_mean, rtol=1e-5, atol=1e-5), (loss, ref_mean)

    loss_sum = jax.block_until_ready(my_bce_loss(x, t, reduction="sum"))
    ref_sum = jnp.sum(ref_elem)
    assert jnp.allclose(loss_sum, ref_sum, rtol=1e-5, atol=1e-5), (loss_sum, ref_sum)

    print("KERNEL_OK")
</pallas_src>

<mosaic_0001>
module attributes {stable_mosaic.version = 11 : i64} {
  func.func @_bce_kernel(%arg0: i32, %arg1: i32, %arg2: memref<16x128xf32, #tpu.memory_space<vmem>>, %arg3: memref<16x128xf32, #tpu.memory_space<vmem>>, %arg4: memref<1x8x128xf32, #tpu.memory_space<vmem>>, %arg5: memref<8x128xf32, #tpu.memory_space<vmem>>) attributes {dimension_semantics = [#tpu.dimension_semantics<parallel>, #tpu.dimension_semantics<arbitrary>], iteration_bounds = array<i64: 2, 1>, scalar_prefetch = 0 : i64, scratch_operands = 1 : i64, tpu.core_type = #tpu.core_type<tc>, window_params = [{transform_indices = @transform_0, window_bounds = array<i64: 16, 128>}, {transform_indices = @transform_1, window_bounds = array<i64: 16, 128>}, {transform_indices = @transform_2, window_bounds = array<i64: 1, 8, 128>}]} {
    %c0_i32 = arith.constant 0 : i32
    %0 = arith.cmpi eq, %arg1, %c0_i32 : i32
    %1 = arith.extui %0 : i1 to i32
    %c0_i32_0 = arith.constant 0 : i32
    %2 = arith.cmpi ne, %1, %c0_i32_0 : i32
    scf.if %2 {
      %cst_16 = arith.constant 0.000000e+00 : f32
      %42 = vector.broadcast %cst_16 : f32 to vector<8x128xf32>
      %c0_17 = arith.constant 0 : index
      %c0_18 = arith.constant 0 : index
      %43 = vector.load %arg5[%c0_17, %c0_18] : memref<8x128xf32, #tpu.memory_space<vmem>>, vector<8x128xf32>
      tpu.vector_store %arg5[%c0_17, %c0_18], %42 {strides = array<i32>} : memref<8x128xf32, #tpu.memory_space<vmem>>, vector<8x128xf32>,
    } else {
    }
    %c0 = arith.constant 0 : index
    %c0_1 = arith.constant 0 : index
    %3 = vector.load %arg2[%c0, %c0_1] : memref<16x128xf32, #tpu.memory_space<vmem>>, vector<16x128xf32>
    %c0_2 = arith.constant 0 : index
    %c0_3 = arith.constant 0 : index
    %4 = vector.load %arg3[%c0_2, %c0_3] : memref<16x128xf32, #tpu.memory_space<vmem>>, vector<16x128xf32>
    %c1_i32 = arith.constant 1 : i32
    %5 = arith.muli %arg0, %c1_i32 : i32
    %6 = arith.addi %5, %arg1 : i32
    %7 = tpu.iota {dimensions = array<i32: 0>} : vector<16x128xi32>
    %8 = tpu.iota {dimensions = array<i32: 1>} : vector<16x128xi32>
    %c16_i32 = arith.constant 16 : i32
    %9 = arith.muli %6, %c16_i32 : i32
    %10 = vector.broadcast %9 : i32 to vector<16x128xi32>
    %11 = arith.addi %10, %7 : vector<16x128xi32>
    %c128_i32 = arith.constant 128 : i32
    %12 = vector.broadcast %c128_i32 : i32 to vector<16x128xi32>
    %13 = arith.muli %11, %12 : vector<16x128xi32>
    %14 = arith.addi %13, %8 : vector<16x128xi32>
    %c2048_i32 = arith.constant 2048 : i32
    %15 = vector.broadcast %c2048_i32 : i32 to vector<16x128xi32>
    %16 = arith.cmpi slt, %14, %15 : vector<16x128xi32>
    %cst = arith.constant 5.000000e-01 : f32
    %17 = vector.broadcast %cst : f32 to vector<16x128xf32>
    %18 = arith.select %16, %3, %17 : vector<16x128xi1>, vector<16x128xf32>
    %cst_4 = arith.constant 0.000000e+00 : f32
    %19 = vector.broadcast %cst_4 : f32 to vector<16x128xf32>
    %20 = arith.select %16, %4, %19 : vector<16x128xi1>, vector<16x128xf32>
    %21 = math.log %18 : vector<16x128xf32>
    %22 = arith.mulf %20, %21 : vector<16x128xf32>
    %cst_5 = arith.constant 1.000000e+00 : f32
    %23 = vector.broadcast %cst_5 : f32 to vector<16x128xf32>
    %24 = arith.subf %23, %20 : vector<16x128xf32>
    %cst_6 = arith.constant 1.000000e+00 : f32
    %25 = vector.broadcast %cst_6 : f32 to vector<16x128xf32>
    %26 = arith.subf %25, %18 : vector<16x128xf32>
    %27 = math.log %26 : vector<16x128xf32>
    %28 = arith.mulf %24, %27 : vector<16x128xf32>
    %29 = arith.addf %22, %28 : vector<16x128xf32>
    %cst_7 = arith.constant 0.000000e+00 : f32
    %30 = vector.broadcast %cst_7 : f32 to vector<16x128xf32>
    %31 = arith.subf %30, %29 : vector<16x128xf32>
    %cst_8 = arith.constant 0.000000e+00 : f32
    %32 = vector.broadcast %cst_8 : f32 to vector<16x128xf32>
    %33 = arith.select %16, %31, %32 : vector<16x128xi1>, vector<16x128xf32>
    %c0_9 = arith.constant 0 : index
    %c0_10 = arith.constant 0 : index
    %34 = vector.load %arg5[%c0_9, %c0_10] : memref<8x128xf32, #tpu.memory_space<vmem>>, vector<8x128xf32>
    %35 = vector.shape_cast %33 : vector<16x128xf32> to vector<2x8x128xf32>
    %cst_11 = arith.constant dense<0.000000e+00> : vector<8x128xf32>
    %36 = vector.multi_reduction <add>, %35, %cst_11 [0] : vector<2x8x128xf32> to vector<8x128xf32>
    %37 = arith.addf %34, %36 : vector<8x128xf32>
    %c0_12 = arith.constant 0 : index
    %c0_13 = arith.constant 0 : index
    %38 = vector.load %arg5[%c0_12, %c0_13] : memref<8x128xf32, #tpu.memory_space<vmem>>, vector<8x128xf32>
    tpu.vector_store %arg5[%c0_12, %c0_13], %37 {strides = array<i32>} : memref<8x128xf32, #tpu.memory_space<vmem>>, vector<8x128xf32>,
    %c0_i32_14 = arith.constant 0 : i32
    %39 = arith.cmpi eq, %arg1, %c0_i32_14 : i32
    %40 = arith.extui %39 : i1 to i32
    %c0_i32_15 = arith.constant 0 : i32
    %41 = arith.cmpi ne, %40, %c0_i32_15 : i32
    scf.if %41 {
      %c0_16 = arith.constant 0 : index
      %c0_17 = arith.constant 0 : index
      %42 = vector.load %arg5[%c0_16, %c0_17] : memref<8x128xf32, #tpu.memory_space<vmem>>, vector<8x128xf32>
      %43 = vector.shape_cast %42 : vector<8x128xf32> to vector<1x8x128xf32>
      %cst_18 = arith.constant dense<0.000000e+00> : vector<1xf32>
      %44 = vector.multi_reduction <add>, %43, %cst_18 [1, 2] : vector<1x8x128xf32> to vector<1xf32>
      %45 = vector.shape_cast %44 : vector<1xf32> to vector<1x1x1xf32>
      %46 = vector.extract %45[0, 0, 0] : f32 from vector<1x1x1xf32>
      %47 = tpu.iota {dimensions = array<i32: 1>} : vector<1x8x128xi32>
      %48 = tpu.iota {dimensions = array<i32: 2>} : vector<1x8x128xi32>
      %c0_i32_19 = arith.constant 0 : i32
      %49 = vector.broadcast %c0_i32_19 : i32 to vector<1x8x128xi32>
      %50 = arith.cmpi eq, %47, %49 : vector<1x8x128xi32>
      %c0_i32_20 = arith.constant 0 : i32
      %51 = vector.broadcast %c0_i32_20 : i32 to vector<1x8x128xi32>
      %52 = arith.cmpi eq, %48, %51 : vector<1x8x128xi32>
      %53 = arith.andi %50, %52 : vector<1x8x128xi1>
      %cst_21 = arith.constant 0.000000e+00 : f32
      %54 = vector.broadcast %46 : f32 to vector<1x8x128xf32>
      %55 = vector.broadcast %cst_21 : f32 to vector<1x8x128xf32>
      %56 = arith.select %53, %54, %55 : vector<1x8x128xi1>, vector<1x8x128xf32>
      %c0_22 = arith.constant 0 : index
      %c0_23 = arith.constant 0 : index
      %c0_24 = arith.constant 0 : index
      %57 = vector.load %arg4[%c0_22, %c0_23, %c0_24] : memref<1x8x128xf32, #tpu.memory_space<vmem>>, vector<1x8x128xf32>
      tpu.vector_store %arg4[%c0_22, %c0_23, %c0_24], %56 {strides = array<i32>} : memref<1x8x128xf32, #tpu.memory_space<vmem>>, vector<1x8x128xf32>,
    } else {
    }
    return
  }
  func.func @transform_0(%arg0: i32, %arg1: i32) -> (i32, i32) {
    %c1_i32 = arith.constant 1 : i32
    %0 = arith.muli %arg0, %c1_i32 : i32
    %1 = arith.addi %0, %arg1 : i32
    %c0_i32 = arith.constant 0 : i32
    %2 = arith.minsi %1, %c0_i32 : i32
    %c0_i32_0 = arith.constant 0 : i32
    %c0_i32_1 = arith.constant 0 : i32
    return %2, %c0_i32_0 : i32, i32
  }
  func.func @transform_1(%arg0: i32, %arg1: i32) -> (i32, i32) {
    %c1_i32 = arith.constant 1 : i32
    %0 = arith.muli %arg0, %c1_i32 : i32
    %1 = arith.addi %0, %arg1 : i32
    %c0_i32 = arith.constant 0 : i32
    %2 = arith.minsi %1, %c0_i32 : i32
    %c0_i32_0 = arith.constant 0 : i32
    %c0_i32_1 = arith.constant 0 : i32
    return %2, %c0_i32_0 : i32, i32
  }
  func.func @transform_2(%arg0: i32, %arg1: i32) -> (i32, i32, i32) {
    %c0_i32 = arith.constant 0 : i32
    %c0_i32_0 = arith.constant 0 : i32
    %c0_i32_1 = arith.constant 0 : i32
    return %arg0, %c0_i32, %c0_i32_0 : i32, i32, i32
  }
}

</mosaic_0001>

<llo_original>
// kernel: tpu_custom_call.1
$region0: #{tpu_custom_call.1}
  #allocation0 [shape = 'u32[]', space=smem, size = 0x4, offset = 0x4, fixed_abs, tag = 'smem constant byte address 0x4 - core index']
  #allocation1 [shape = 'u32[144,128]{1,0:T(1,128)}', space=vmem, size = 0x12000, scoped, tag = 'internal scratch']
  #allocation2 [shape = 'f32[8,128]{1,0:T(8,128)}', space=vmem, size = 0x1000, scoped, tag = 'scratch operand']
  %s0 = inlined_call_operand.hbm [shape: f32[16,128], index: 0, kind: input, shape index: {}]
  %s1 = inlined_call_operand.hbm [shape: f32[16,128], index: 1, kind: input, shape index: {}]
  %s2 = inlined_call_operand.hbm [shape: f32[2,8,128], index: 2, kind: output, shape index: {}]
  %s3 = sld [smem:[#allocation0]]
  $region57: #{tpu_custom_call.1} parent=0
    _
  %s5 = ssub.s32 1, %s3
  %s6 = scalar_select 0, %s5, %s3
  $region1: #{tpu_custom_call.1} parent=0
    #allocation3 [shape = 'u8[16384]{0}', space=vmem, size = 0x4000, scoped, tag = 'input window, operand 0']
    #allocation4 [shape = 's32[2]{0}', space=sflag, size = 0x8, scoped, tag = 'scoped memory for tpu_custom_call.1']
    #allocation5 [shape = 's32[2]{0}', space=sflag, size = 0x8, scoped, tag = 'scoped memory for tpu_custom_call.1']
    #allocation6 [shape = 'u8[16384]{0}', space=vmem, size = 0x4000, scoped, tag = 'input window, operand 1']
    #allocation7 [shape = 's32[2]{0}', space=sflag, size = 0x8, scoped, tag = 'scoped memory for tpu_custom_call.1']
    #allocation8 [shape = 'u8[8192]{0}', space=vmem, size = 0x2000, scoped, tag = 'output window, operand 0']
    %7 = vsyncpa [#allocation4], 0
    %s8 = scalar_lea.sflag [#allocation4], 1
    %9 = vsyncpa %s8, 0
    %10 = vsyncpa [#allocation7], 0
    %s11 = scalar_lea.sflag [#allocation7], 1
    %12 = vsyncpa %s11, 0
    %13 = vsyncpa [#allocation5], 0
    %s14 = scalar_lea.sflag [#allocation5], 1
    %15 = vsyncpa %s14, 0
    loop: start=0, step=1, limit=4
    $region2: #{tpu_custom_call.1} parent=1 // loop_pre_header
      _
    $region3: #{tpu_custom_call.1} parent=1 // loop_header
      %s17 = sphi 0, %s21
      %p18 = scmp.ge.s32.totalorder %s17, 4
      %s24 = sphi 0, %s36
      %s25 = sphi 0, %s32
      %s26 = sphi 0, %s24
      %s27 = sphi 0, %s25
      %s28 = sphi 0, %s26
      %s29 = sphi 0, %s27
      %s45 = sphi 0, %s47
      %s48 = sphi 0, %s45
      %s49 = sphi 0, %s48
      %s65 = sphi 0, %s49
      %s77 = sphi 0, %s79
      %s80 = sphi 0, %s77
      %s81 = sphi 0, %s80
      %s97 = sphi 0, %s81
      %s103 = sphi 0, %s105
      %s106 = sphi 0, %s103
      %s107 = sphi 0, %s106
      %s123 = sphi 0, %s107
    $region4: #{tpu_custom_call.1} parent=1 // loop_header_branch
      %20 = sbr.rel (%p18) target = $region8
    $region5: #{tpu_custom_call.1} parent=1 // loop_body
      %s22 = ssub.s32 %s17, 1
      %s23 = ssub.s32 %s17, 2
      %s30 = sadd.s32 1, %s25
      %p31 = scmp.ge.s32.totalorder %s30, 1
      %s32 = scalar_select %p31, 0, %s30
      %s33 = sadd.s32 1, %s24
      %s34 = scalar_select %p31, %s33, %s24
      %p35 = scmp.ge.s32.totalorder %s34, 2
      %s36 = scalar_select %p35, 0, %s34
      %s37 = sadd.s32 %s24, %s25
      %p38 = scmp.lt.s32.totalorder %s37, 0
      %s39 = scalar_select %p38, %s37, 0
      %s40 = sadd.s32 %s36, %s32
      %p41 = scmp.lt.s32.totalorder %s40, 0
      %s42 = scalar_select %p41, %s40, 0
      %s43 = ssub.s32 %s39, %s42
      %p44 = scmp.eq.s32.totalorder %s43, 0
      %s46 = sadd.s32 %s45, 1
      %s47 = scalar_select %p44, %s45, %s46
      %p50 = pneg %p44
      %p51 = scmp.eq.s32.totalorder %s17, 1
      %p52 = por %p50, %p51
      %p53 = scmp.ne.s32.totalorder %s45, %s48
      %p54 = scmp.eq.s32.totalorder %s17, 0
      %p55 = por %p53, %p54
      %p56 = scmp.ne.s32.totalorder %s45, %s48
      %p57 = scmp.eq.s32.totalorder %s22, 1
      %p58 = por %p56, %p57
      %p59 = scmp.ne.s32.totalorder %s48, %s49
      %p60 = scmp.eq.s32.totalorder %s22, 0
      %p61 = por %p59, %p60
      %p62 = scmp.ne.s32.totalorder %s48, %s49
      %p63 = scmp.eq.s32.totalorder %s23, 1
      %p64 = por %p62, %p63
      %p66 = scmp.ne.s32.totalorder %s49, %s65
      %p67 = scmp.eq.s32.totalorder %s23, 0
      %p68 = por %p66, %p67
      %s69 = sadd.s32 %s24, %s25
      %p70 = scmp.lt.s32.totalorder %s69, 0
      %s71 = scalar_select %p70, %s69, 0
      %s72 = sadd.s32 %s36, %s32
      %p73 = scmp.lt.s32.totalorder %s72, 0
      %s74 = scalar_select %p73, %s72, 0
      %s75 = ssub.s32 %s71, %s74
      %p76 = scmp.eq.s32.totalorder %s75, 0
      %s78 = sadd.s32 %s77, 1
      %s79 = scalar_select %p76, %s77, %s78
      %p82 = pneg %p76
      %p83 = scmp.eq.s32.totalorder %s17, 1
      %p84 = por %p82, %p83
      %p85 = scmp.ne.s32.totalorder %s77, %s80
      %p86 = scmp.eq.s32.totalorder %s17, 0
      %p87 = por %p85, %p86
      %p88 = scmp.ne.s32.totalorder %s77, %s80
      %p89 = scmp.eq.s32.totalorder %s22, 1
      %p90 = por %p88, %p89
      %p91 = scmp.ne.s32.totalorder %s80, %s81
      %p92 = scmp.eq.s32.totalorder %s22, 0
      %p93 = por %p91, %p92
      %p94 = scmp.ne.s32.totalorder %s80, %s81
      %p95 = scmp.eq.s32.totalorder %s23, 1
      %p96 = por %p94, %p95
      %p98 = scmp.ne.s32.totalorder %s81, %s97
      %p99 = scmp.eq.s32.totalorder %s23, 0
      %p100 = por %p98, %p99
      %s101 = ssub.s32 %s24, %s36
      %p102 = scmp.eq.s32.totalorder %s101, 0
      %s104 = sadd.s32 %s103, 1
      %s105 = scalar_select %p102, %s103, %s104
      %p108 = pneg %p102
      %p109 = scmp.eq.s32.totalorder %s17, 1
      %p110 = por %p108, %p109
      %p111 = scmp.ne.s32.totalorder %s103, %s106
      %p112 = scmp.eq.s32.totalorder %s17, 0
      %p113 = por %p111, %p112
      %p114 = scmp.ne.s32.totalorder %s103, %s106
      %p115 = scmp.eq.s32.totalorder %s22, 1
      %p116 = por %p114, %p115
      %p117 = scmp.ne.s32.totalorder %s106, %s107
      %p118 = scmp.eq.s32.totalorder %s22, 0
      %p119 = por %p117, %p118
      %p120 = scmp.ne.s32.totalorder %s106, %s107
      %p121 = scmp.eq.s32.totalorder %s23, 1
      %p122 = por %p120, %p121
      %p124 = scmp.ne.s32.totalorder %s107, %s123
      %p125 = scmp.eq.s32.totalorder %s23, 0
      %p126 = por %p124, %p125
      %p127 = scmp.le.s32.totalorder 1, %s17
      %p128 = scmp.lt.s32.totalorder %s17, 3
      %p129 = pnand %p127, %p128
      %p130 = pneg %p129
      // Predicated region
      $region9: #{tpu_custom_call.1} parent=5 // pred_check
        _
      $region10: #{tpu_custom_call.1} parent=5 // pred_check_branch
        %132 = sbr.rel (%p129) target = $region12
      $region11: #{tpu_custom_call.1} parent=5 // pred_region
        %s133 = ssub.s32 %s17, 1
      $region12: #{tpu_custom_call.1} parent=5 // pred_fallthru
        _
      %p134 = scmp.lt.s32.totalorder %s17, 2
      // Predicated region
      $region13: #{tpu_custom_call.1} parent=5 // pred_check
        %p135 = pneg %p134
      $region14: #{tpu_custom_call.1} parent=5 // pred_check_branch
        %137 = sbr.rel (%p135) target = $region16
      $region15: #{tpu_custom_call.1} parent=5 // pred_region
        // Predicated region
        $region17: #{tpu_custom_call.1} parent=15 // pred_check
          %p138 = pneg %p55
        $region18: #{tpu_custom_call.1} parent=15 // pred_check_branch
          %140 = sbr.rel (%p138) target = $region20
        $region19: #{tpu_custom_call.1} parent=15 // pred_region
          %s141 = sand.u32 %s45, 1
          %s142 = scalar_lea.sflag [#allocation4], %s141
          %s143 = sand.u32 %s45, 1
          %s144 = smul.addr %s143, 16
          %s145 = scalar_lea.vmem [#allocation3], %s144
          %s146 = sadd.s32 %s24, %s25
          %p147 = scmp.lt.s32.totalorder %s146, 0
          %s148 = scalar_select %p147, %s146, 0
          %s149 = smul.u32 2, %s148
          %s151 = ssub.s32 256, 256
          %152 = vsyncadd %s142, %s151
          %s153 = smul.addr %s149, 128
          %s154 = scalar_lea.hbm %s0, %s153
          %s155 = sshll.u32 %s145, 4
          %s156 = int_to_ptr.vmem [resolvable:$true] %s155
          %161 = dma.hbm_to_vmem [thread:$0]  %s154, 256, %s156, %s142, 128, 128, 8
        $region20: #{tpu_custom_call.1} parent=15 // pred_fallthru
          _
        // Predicated region
        $region21: #{tpu_custom_call.1} parent=15 // pred_check
          %p162 = pneg %p87
        $region22: #{tpu_custom_call.1} parent=15 // pred_check_branch
          %164 = sbr.rel (%p162) target = $region24
        $region23: #{tpu_custom_call.1} parent=15 // pred_region
          %s165 = sand.u32 %s77, 1
          %s166 = scalar_lea.sflag [#allocation7], %s165
          %s167 = sand.u32 %s77, 1
          %s168 = smul.addr %s167, 16
          %s169 = scalar_lea.vmem [#allocation6], %s168
          %s170 = sadd.s32 %s24, %s25
          %p171 = scmp.lt.s32.totalorder %s170, 0
          %s172 = scalar_select %p171, %s170, 0
          %s173 = smul.u32 2, %s172
          %s175 = ssub.s32 256, 256
          %176 = vsyncadd %s166, %s175
          %s177 = smul.addr %s173, 128
          %s178 = scalar_lea.hbm %s1, %s177
          %s179 = sshll.u32 %s169, 4
          %s180 = int_to_ptr.vmem [resolvable:$true] %s179
          %185 = dma.hbm_to_vmem [thread:$0]  %s178, 256, %s180, %s166, 128, 128, 8
        $region24: #{tpu_custom_call.1} parent=15 // pred_fallthru
          _
      $region16: #{tpu_custom_call.1} parent=5 // pred_fallthru
        _
      %p186 = scmp.le.s32.totalorder 1, %s17
      %p187 = scmp.lt.s32.totalorder %s17, 3
      %p188 = pnand %p186, %p187
      %p189 = pneg %p188
      // Predicated region
      $region25: #{tpu_custom_call.1} parent=5 // pred_check
        _
      $region26: #{tpu_custom_call.1} parent=5 // pred_check_branch
        %191 = sbr.rel (%p188) target = $region28
      $region27: #{tpu_custom_call.1} parent=5 // pred_region
        %s192 = ssub.s32 %s17, 1
        %s193 = sand.u32 %s48, 1
        %s194 = scalar_lea.sflag [#allocation4], %s193
        %s195 = sand.u32 %s48, 1
        %s196 = smul.addr %s195, 16
        %s197 = scalar_lea.vmem [#allocation3], %s196
        // Predicated region
        $region29: #{tpu_custom_call.1} parent=27 // pred_check
          %p198 = pneg %p61
        $region30: #{tpu_custom_call.1} parent=27 // pred_check_branch
          %200 = sbr.rel (%p198) target = $region32
        $region31: #{tpu_custom_call.1} parent=27 // pred_region
          %201 = dma.done %s194, 256
        $region32: #{tpu_custom_call.1} parent=27 // pred_fallthru
          _
        %s202 = sand.u32 %s80, 1
        %s203 = scalar_lea.sflag [#allocation7], %s202
        %s204 = sand.u32 %s80, 1
        %s205 = smul.addr %s204, 16
        %s206 = scalar_lea.vmem [#allocation6], %s205
        // Predicated region
        $region33: #{tpu_custom_call.1} parent=27 // pred_check
          %p207 = pneg %p93
        $region34: #{tpu_custom_call.1} parent=27 // pred_check_branch
          %209 = sbr.rel (%p207) target = $region36
        $region35: #{tpu_custom_call.1} parent=27 // pred_region
          %210 = dma.done %s203, 256
        $region36: #{tpu_custom_call.1} parent=27 // pred_fallthru
          _
        %s211 = sand.u32 %s48, 1
        %s212 = scalar_lea.sflag [#allocation4], %s211
        %s213 = sand.u32 %s48, 1
        %s214 = smul.addr %s213, 16
        %s215 = scalar_lea.vmem [#allocation3], %s214
        %p216 = pneg %p61
        %p217 = pneg %p58
        %s218 = sand.u32 %s80, 1
        %s219 = scalar_lea.sflag [#allocation7], %s218
        %s220 = sand.u32 %s80, 1
        %s221 = smul.addr %s220, 16
        %s222 = scalar_lea.vmem [#allocation6], %s221
        %p223 = pneg %p93
        %p224 = pneg %p90
        %p225 = pneg %p119
        %p226 = pneg %p116
        %s227 = sand.u32 %s106, 1
        %s228 = scalar_lea.sflag [#allocation5], %s227
        %s229 = sand.u32 %s106, 1
        %s230 = smul.addr %s229, 8
        %s231 = scalar_lea.vmem [#allocation8], %s230
        %s232 = sadd.s32 %s26, %s27
        %p233 = scmp.lt.s32.totalorder %s232, 0
        %s234 = scalar_select %p233, %s232, 0
        %s235 = smul.u32 2, %s234
        %s236 = sadd.s32 %s26, %s27
        %p237 = scmp.lt.s32.totalorder %s236, 0
        %s238 = scalar_select %p237, %s236, 0
        %s239 = smul.u32 2, %s238
        %p240 = scmp.eq.s32.totalorder %s27, 0
        // Predicated region
        $region37: #{tpu_custom_call.1} parent=27 // pred_check
          %p241 = pneg %p240
        $region38: #{tpu_custom_call.1} parent=27 // pred_check_branch
          %243 = sbr.rel (%p241) target = $region40
        $region39: #{tpu_custom_call.1} parent=27 // pred_region
          %244 = vst [vmem:[#allocation2] sm:$0xff] 0.0
        $region40: #{tpu_custom_call.1} parent=27 // pred_fallthru
          _
        %v245 = vld [vmem:[%s197] sm:$0xff]
        %v246 = vld [vmem:[%s197 + $0x8] sm:$0xff]
        %v247 = vld [vmem:[%s206] sm:$0xff]
        %v248 = vld [vmem:[%s206 + $0x8] sm:$0xff]
        %s249 = sadd.s32 %s26, %s27
        %v250 = vlaneseq
        %v251 = vshrl.u32 %v250, 7
        %v252 = vadd.s32 %v251, 8
        %v253 = vlaneseq
        %v254 = vand.u32 %v253, 127
        %s255 = smul.u32 %s249, 16
        %v256 = vstv %s255
        %v257 = vadd.s32 %v256, %v251
        %v258 = vadd.s32 %v256, %v252
        %v259 = vmul.u32 %v257, 128
        %v260 = vmul.u32 %v258, 128
        %v261 = vadd.s32 %v259, %v254
        %v262 = vadd.s32 %v260, %v254
        %vm263 = vcmp.lt.s32.totalorder %v261, 2048
        %vm264 = vcmp.lt.s32.totalorder %v262, 2048
        %v265 = vsel %vm263, %v245, 0.5
        %v266 = vsel %vm264, %v246, 0.5
        %v267 = vsel %vm263, %v247, 0.0
        %v268 = vsel %vm264, %v248, 0.0
        %v269 = vlog2.pop %v265
        %v270 = vmul.f32 %v269, 0.6931472
        %v271 = vlog2.pop %v266
        %v272 = vmul.f32 %v271, 0.6931472
        %v273 = vmul.f32 %v267, %v270
        %v274 = vmul.f32 %v268, %v272
        %v275 = vsub.f32 1.0, %v267
        %v276 = vsub.f32 1.0, %v268
        %v277 = vsub.f32 1.0, %v265
        %v278 = vsub.f32 1.0, %v266
        %v279 = vlog2.pop %v277
        %v280 = vmul.f32 %v279, 0.6931472
        %v281 = vlog2.pop %v278
        %v282 = vmul.f32 %v281, 0.6931472
        %v283 = vmul.f32 %v275, %v280
        %v284 = vmul.f32 %v276, %v282
        %v285 = vadd.f32 %v273, %v283
        %v286 = vadd.f32 %v274, %v284
        %v287 = vsub.f32 0.0, %v285
        %v288 = vsub.f32 0.0, %v286
        %v289 = vsel %vm263, %v287, 0.0
        %v290 = vsel %vm264, %v288, 0.0
        %v291 = vld [vmem:[#allocation2] sm:$0xff]
        %v292 = vadd.f32 %v289, %v290
        %v293 = vadd.f32 %v291, %v292
        %294 = vst [vmem:[#allocation2] sm:$0xff] %v293
        // Predicated region
        $region41: #{tpu_custom_call.1} parent=27 // pred_check
          %p295 = pneg %p240
        $region42: #{tpu_custom_call.1} parent=27 // pred_check_branch
          %297 = sbr.rel (%p295) target = $region44
        $region43: #{tpu_custom_call.1} parent=27 // pred_region
          %v298 = vld [vmem:[#allocation2] sm:$0xff]
          %299 = vadd.xlane.f32.xlu0 %v298
          %v300 = vpop.xlane.xlu0 %299
          %v301 = vrot.slane %v300, 4
          %v302 = vadd.f32 %v300, %v301
          %v303 = vrot.slane %v302, 2
          %v304 = vadd.f32 %v302, %v303
          %v305 = vrot.slane %v304, 1
          %v306 = vadd.f32 %v304, %v305
          %s307 = vtos %v306
          %vm308 = vcmp.eq.s32.totalorder %v251, 0
          %vm309 = vcmp.eq.s32.totalorder %v254, 0
          %vm310 = vmand %vm308, %vm309
          %v311 = vstv %s307
          %v312 = vsel %vm310, %v311, 0.0
          %313 = vst [vmem:[%s231] sm:$0xff] %v312
        $region44: #{tpu_custom_call.1} parent=27 // pred_fallthru
          _
        %s314 = sand.u32 %s106, 1
        %s315 = scalar_lea.sflag [#allocation5], %s314
        %s316 = sand.u32 %s106, 1
        %s317 = smul.addr %s316, 8
        %s318 = scalar_lea.vmem [#allocation8], %s317
        // Predicated region
        $region45: #{tpu_custom_call.1} parent=27 // pred_check
          %p319 = pneg %p116
        $region46: #{tpu_custom_call.1} parent=27 // pred_check_branch
          %321 = sbr.rel (%p319) target = $region48
        $region47: #{tpu_custom_call.1} parent=27 // pred_region
          %s323 = ssub.s32 128, 128
          %324 = vsyncadd %s315, %s323
          %s325 = smul.addr %s26, 128
          %s326 = scalar_lea.hbm %s2, %s325
          %s328 = sshll.u32 %s318, 4
          %s329 = int_to_ptr.vmem [resolvable:$true] %s328
          %331 = dma.vmem_to_hbm [thread:$0]  %s329, 128, %s326, %s315
        $region48: #{tpu_custom_call.1} parent=27 // pred_fallthru
          _
      $region28: #{tpu_custom_call.1} parent=5 // pred_fallthru
        _
      %p332 = scmp.le.s32.totalorder 2, %s17
      // Predicated region
      $region49: #{tpu_custom_call.1} parent=5 // pred_check
        %p333 = pneg %p332
      $region50: #{tpu_custom_call.1} parent=5 // pred_check_branch
        %335 = sbr.rel (%p333) target = $region52
      $region51: #{tpu_custom_call.1} parent=5 // pred_region
        %s336 = ssub.s32 %s17, 2
        // Predicated region
        $region53: #{tpu_custom_call.1} parent=51 // pred_check
          %p337 = pneg %p122
        $region54: #{tpu_custom_call.1} parent=51 // pred_check_branch
          %339 = sbr.rel (%p337) target = $region56
        $region55: #{tpu_custom_call.1} parent=51 // pred_region
          %s340 = sand.u32 %s107, 1
          %s341 = scalar_lea.sflag [#allocation5], %s340
          %s342 = sand.u32 %s107, 1
          %s343 = smul.addr %s342, 8
          %s344 = scalar_lea.vmem [#allocation8], %s343
          %345 = dma.done %s341, 128
        $region56: #{tpu_custom_call.1} parent=51 // pred_fallthru
          _
      $region52: #{tpu_custom_call.1} parent=5 // pred_fallthru
        _
    $region6: #{tpu_custom_call.1} parent=1 // loop_footer
      %s21 = sadd.s32 1, %s17
    $region7: #{tpu_custom_call.1} parent=1 // loop_footer_branch
      %16 = sbr.rel target = $region3
    $region8: #{tpu_custom_call.1} parent=1 // loop_exit
      _
    %346 = vsyncpa [#allocation4], 1
    %s347 = scalar_lea.sflag [#allocation4], 1
    %348 = vsyncpa %s347, 1
    %349 = vsyncpa [#allocation7], 1
    %s350 = scalar_lea.sflag [#allocation7], 1
    %351 = vsyncpa %s350, 1
    %352 = vsyncpa [#allocation5], 1
    %s353 = scalar_lea.sflag [#allocation5], 1
    %354 = vsyncpa %s353, 1

</llo_original>
